<compile_context>
chip_gen: v7x
topology: tpu7x:2x2x1
jax: 0.10.0
libtpu: 0.0.40
codegen_flags: <defaults>
</compile_context>

<pallas_src>
import functools
import math

import jax
import jax.numpy as jnp
from jax.experimental import pallas as pl
from jax.experimental.pallas import tpu as pltpu


# ---------------------------------------------------------------------------
# Kernel
# ---------------------------------------------------------------------------
def _random_layer_kernel(*refs, num_inputs, scale):
    # refs = (x0, w0, x1, w1, ..., x_{n-1}, w_{n-1}, out)
    out_ref = refs[-1]
    acc = jnp.dot(refs[0][...], refs[1][...],
                  preferred_element_type=jnp.float32)
    if scale is not None:  # skipped when the scale was folded into W0 at init
        acc = acc * scale
    for i in range(1, num_inputs):
        acc = acc * jnp.dot(refs[2 * i][...], refs[2 * i + 1][...],
                            preferred_element_type=jnp.float32)
    out_ref[...] = acc.astype(out_ref.dtype)


# ---------------------------------------------------------------------------
# Tile selection (VMEM-budgeted, MXU/HBM-aware)
# ---------------------------------------------------------------------------
_VMEM_LIMIT_BYTES = 64 * 1024 * 1024   # <= physical VMEM on v5e/v6e (128 MiB) and v7x (64 MiB)
_VMEM_TILE_BUDGET = 40 * 1024 * 1024   # headroom for compiler scratch on v7x


def _vmem_estimate_bytes(tile_m, tile_n, d_list, itemsize=4):
    out_b = 2 * tile_m * tile_n * itemsize                  # double-buffered output tile
    x_b = sum(2 * tile_m * d * itemsize for d in d_list)    # activations (double-buffered)
    w_b = sum(2 * d * tile_n * itemsize for d in d_list)    # streamed weight column blocks
    return out_b + x_b + w_b


def _choose_tiles(B, D, d_list):
    # Output-column tile: as wide as possible, multiple of 256 when D >= 256.
    if D % 128 != 0:
        tile_n = D                      # cannot tile N under the (8,128) rule
    elif D >= 512 and D % 512 == 0:
        tile_n = 512
    elif D >= 256 and D % 256 == 0:
        tile_n = 256
    else:
        tile_n = D                      # e.g. D == 128 or odd multiple of 128
    # Batch tile: whole batch resident when small, else 256-row tiles.
    if B <= 256 or B % 8 != 0:
        tile_m = B
    else:
        tile_m = 256

    def fits(tm, tn):
        return _vmem_estimate_bytes(tm, tn, d_list) <= _VMEM_TILE_BUDGET

    while (not fits(tile_m, tile_n)) and tile_n > 128 and tile_n % 256 == 0 \
            and D % (tile_n // 2) == 0:
        tile_n //= 2
    while (not fits(tile_m, tile_n)) and tile_m > 8 and tile_m % 16 == 0:
        tile_m //= 2

    # v7x megacore: prefer >= 2 parallel grid steps when the output axis allows it.
    if pl.cdiv(B, tile_m) * pl.cdiv(D, tile_n) == 1 and tile_n >= 512 \
            and D % (tile_n // 2) == 0:
        tile_n //= 2
    return tile_m, tile_n


# ---------------------------------------------------------------------------
# Forward wrapper
# ---------------------------------------------------------------------------
def random_layer_forward(input_list, random_matrices, *, tile_m=None, tile_n=None,
                         scale_folded=False, compute_dtype=None):
    """Fused Pallas implementation of RandomLayer.forward.

    input_list:       list of [B, d_i] float32 arrays
    random_matrices:  list of [d_i, output_dim] float32 arrays
    scale_folded:     True if the 1/output_dim**(1/N) scale was already folded
                      into random_matrices[0] at init time.
    compute_dtype:    optional narrower streaming dtype (e.g. jnp.bfloat16);
                      accumulation stays f32. Default: f32 everywhere (exact).
    returns:          [B, output_dim] float32
    """
    num_inputs = len(input_list)
    assert num_inputs == len(random_matrices) and num_inputs >= 1
    B = input_list[0].shape[0]
    D = random_matrices[0].shape[1]
    d_list = [w.shape[0] for w in random_matrices]
    for x, w in zip(input_list, random_matrices):
        assert x.shape == (B, w.shape[0]) and w.shape[1] == D

    auto_m, auto_n = _choose_tiles(B, D, d_list)
    tile_m = auto_m if tile_m is None else tile_m
    tile_n = auto_n if tile_n is None else tile_n
    grid_m = pl.cdiv(B, tile_m)
    grid_n = pl.cdiv(D, tile_n)

    scale = None if scale_folded else 1.0 / math.pow(float(D), 1.0 / num_inputs)

    if compute_dtype is not None:
        xs = [x.astype(compute_dtype) for x in input_list]
        ws = [w.astype(compute_dtype) for w in random_matrices]
    else:
        xs = list(input_list)
        ws = list(random_matrices)

    args = []
    for x, w in zip(xs, ws):
        args.append(x)
        args.append(w)

    kernel = functools.partial(_random_layer_kernel,
                               num_inputs=num_inputs, scale=scale)

    in_specs = []
    for w in ws:
        d_i = w.shape[0]
        # x_i: block index constant along the column axis -> stays resident,
        # not re-fetched between output-column steps.
        in_specs.append(pl.BlockSpec((tile_m, d_i), lambda i, j: (i, 0)))
        # W_i: streamed one [d_i, tile_n] column block per grid step.
        in_specs.append(pl.BlockSpec((d_i, tile_n), lambda i, j: (0, j)))

    return pl.pallas_call(
        kernel,
        out_shape=jax.ShapeDtypeStruct((B, D), jnp.float32),
        grid_spec=pltpu.PrefetchScalarGridSpec(
            num_scalar_prefetch=0,
            grid=(grid_m, grid_n),       # output-column axis innermost
            in_specs=in_specs,
            out_specs=pl.BlockSpec((tile_m, tile_n), lambda i, j: (i, j)),
        ),
        compiler_params=pltpu.CompilerParams(
            dimension_semantics=("parallel", "parallel"),
            vmem_limit_bytes=_VMEM_LIMIT_BYTES,
        ),
    )(*args)


# ---------------------------------------------------------------------------
# Init helper (torch.rand-style fixed random matrices) + pure-JAX reference
# ---------------------------------------------------------------------------
def init_random_layer(key, input_dim_list, output_dim, *, fold_scale=False,
                      dtype=jnp.float32):
    keys = jax.random.split(key, len(input_dim_list))
    mats = [jax.random.uniform(k, (d, output_dim), dtype=dtype)
            for k, d in zip(keys, input_dim_list)]
    if fold_scale:
        # Fold the 1/output_dim**(1/N) normalization into W0 once at init time.
        scale = 1.0 / math.pow(float(output_dim), 1.0 / len(input_dim_list))
        mats[0] = mats[0] * scale
    return mats


def random_layer_reference(input_list, random_matrices):
    n = len(input_list)
    D = random_matrices[0].shape[1]
    outs = [x @ w for x, w in zip(input_list, random_matrices)]
    ret = outs[0] / math.pow(float(D), 1.0 / n)
    for o in outs[1:]:
        ret = ret * o
    return ret


if __name__ == "__main__":
    key = jax.random.PRNGKey(0)
    k_x0, k_x1, k_w = jax.random.split(key, 3)

    # Small shapes consistent with the module: two inputs (pooled feature +
    # class probabilities), batch=8, input dims [48, 16], output_dim=1024
    # (the module's default output_dim).
    B = 8
    input_dim_list = [48, 16]
    output_dim = 1024

    x0 = jax.random.normal(k_x0, (B, input_dim_list[0]), dtype=jnp.float32)
    x1 = jax.random.normal(k_x1, (B, input_dim_list[1]), dtype=jnp.float32)
    inputs = [x0, x1]

    mats = init_random_layer(k_w, input_dim_list, output_dim)            # unscaled
    mats_folded = init_random_layer(k_w, input_dim_list, output_dim,
                                    fold_scale=True)                     # W0 pre-scaled

    ref = random_layer_reference(inputs, mats)

    # Path 1: kernel applies the 1/D**(1/N) scale itself (exact PyTorch semantics).
    out = jax.block_until_ready(random_layer_forward(inputs, mats))
    assert out.shape == (B, output_dim)
    assert jnp.allclose(out, ref, rtol=1e-4, atol=1e-4), "mismatch (in-kernel scale)"

    # Path 2: scale folded into W0 at init; kernel skips the per-element multiply.
    out_folded = jax.block_until_ready(
        random_layer_forward(inputs, mats_folded, scale_folded=True))
    assert jnp.allclose(out_folded, ref, rtol=1e-4, atol=1e-4), "mismatch (folded scale)"

    print("KERNEL_OK")
</pallas_src>

<mosaic_0001>
module attributes {stable_mosaic.version = 11 : i64} {
  func.func @_random_layer_kernel(%arg0: i32, %arg1: i32, %arg2: memref<8x48xf32, #tpu.memory_space<vmem>>, %arg3: memref<48x512xf32, #tpu.memory_space<vmem>>, %arg4: memref<8x16xf32, #tpu.memory_space<vmem>>, %arg5: memref<16x512xf32, #tpu.memory_space<vmem>>, %arg6: memref<8x512xf32, #tpu.memory_space<vmem>>) attributes {dimension_semantics = [#tpu.dimension_semantics<parallel>, #tpu.dimension_semantics<parallel>], iteration_bounds = array<i64: 1, 2>, scalar_prefetch = 0 : i64, scratch_operands = 0 : i64, tpu.core_type = #tpu.core_type<tc>, window_params = [{transform_indices = @transform_0, window_bounds = array<i64: 8, 48>}, {transform_indices = @transform_1, window_bounds = array<i64: 48, 512>}, {transform_indices = @transform_2, window_bounds = array<i64: 8, 16>}, {transform_indices = @transform_3, window_bounds = array<i64: 16, 512>}, {transform_indices = @transform_4, window_bounds = array<i64: 8, 512>}]} {
    %c0 = arith.constant 0 : index
    %c0_0 = arith.constant 0 : index
    %0 = vector.load %arg2[%c0, %c0_0] : memref<8x48xf32, #tpu.memory_space<vmem>>, vector<8x48xf32>
    %c0_1 = arith.constant 0 : index
    %c0_2 = arith.constant 0 : index
    %1 = vector.load %arg3[%c0_1, %c0_2] : memref<48x512xf32, #tpu.memory_space<vmem>>, vector<48x512xf32>
    %cst = arith.constant dense<0.000000e+00> : vector<8x512xf32>
    %2 = tpu.matmul %0, %1, %cst {dimension_numbers = #tpu.dot_dimension_numbers<[1], [0], [0], [1], [0, 0, 1, 1], [], []>} : vector<8x48xf32>, vector<48x512xf32>, vector<8x512xf32> -> vector<8x512xf32>
    %cst_3 = arith.constant 3.125000e-02 : f32
    %3 = vector.broadcast %cst_3 : f32 to vector<8x512xf32>
    %4 = arith.mulf %2, %3 : vector<8x512xf32>
    %c0_4 = arith.constant 0 : index
    %c0_5 = arith.constant 0 : index
    %5 = vector.load %arg4[%c0_4, %c0_5] : memref<8x16xf32, #tpu.memory_space<vmem>>, vector<8x16xf32>
    %c0_6 = arith.constant 0 : index
    %c0_7 = arith.constant 0 : index
    %6 = vector.load %arg5[%c0_6, %c0_7] : memref<16x512xf32, #tpu.memory_space<vmem>>, vector<16x512xf32>
    %cst_8 = arith.constant dense<0.000000e+00> : vector<8x512xf32>
    %7 = tpu.matmul %5, %6, %cst_8 {dimension_numbers = #tpu.dot_dimension_numbers<[1], [0], [0], [1], [0, 0, 1, 1], [], []>} : vector<8x16xf32>, vector<16x512xf32>, vector<8x512xf32> -> vector<8x512xf32>
    %8 = arith.mulf %4, %7 : vector<8x512xf32>
    %c0_9 = arith.constant 0 : index
    %c0_10 = arith.constant 0 : index
    %9 = vector.load %arg6[%c0_9, %c0_10] : memref<8x512xf32, #tpu.memory_space<vmem>>, vector<8x512xf32>
    tpu.vector_store %arg6[%c0_9, %c0_10], %8 {strides = array<i32>} : memref<8x512xf32, #tpu.memory_space<vmem>>, vector<8x512xf32>,
    return
  }
  func.func @transform_0(%arg0: i32, %arg1: i32) -> (i32, i32) {
    %c0_i32 = arith.constant 0 : i32
    %c0_i32_0 = arith.constant 0 : i32
    return %arg0, %c0_i32 : i32, i32
  }
  func.func @transform_1(%arg0: i32, %arg1: i32) -> (i32, i32) {
    %c0_i32 = arith.constant 0 : i32
    %c0_i32_0 = arith.constant 0 : i32
    return %c0_i32, %arg1 : i32, i32
  }
  func.func @transform_2(%arg0: i32, %arg1: i32) -> (i32, i32) {
    %c0_i32 = arith.constant 0 : i32
    %c0_i32_0 = arith.constant 0 : i32
    return %arg0, %c0_i32 : i32, i32
  }
  func.func @transform_3(%arg0: i32, %arg1: i32) -> (i32, i32) {
    %c0_i32 = arith.constant 0 : i32
    %c0_i32_0 = arith.constant 0 : i32
    return %c0_i32, %arg1 : i32, i32
  }
  func.func @transform_4(%arg0: i32, %arg1: i32) -> (i32, i32) {
    %c0_i32 = arith.constant 0 : i32
    return %arg0, %arg1 : i32, i32
  }
}

</mosaic_0001>

<llo_original>
// kernel: tpu_custom_call.1
$region0: #{tpu_custom_call.1}
  #allocation0 [shape = 'u32[]', space=smem, size = 0x4, offset = 0x4, fixed_abs, tag = 'smem constant byte address 0x4 - core index']
  #allocation1 [shape = 'u32[144,128]{1,0:T(1,128)}', space=vmem, size = 0x12000, scoped, tag = 'internal scratch']
  %s0 = inlined_call_operand.hbm [shape: f32[8,48], index: 0, kind: input, shape index: {}]
  %s1 = inlined_call_operand.hbm [shape: f32[48,1024], index: 1, kind: input, shape index: {}]
  %s2 = inlined_call_operand.hbm [shape: f32[8,16], index: 2, kind: input, shape index: {}]
  %s3 = inlined_call_operand.hbm [shape: f32[16,1024], index: 3, kind: input, shape index: {}]
  %s4 = inlined_call_operand.hbm [shape: f32[8,1024], index: 4, kind: output, shape index: {}]
  %s5 = sld [smem:[#allocation0]]
  $region65: #{tpu_custom_call.1} parent=0
    _
  %s7 = ssub.s32 1, %s5
  %s8 = scalar_select 0, %s7, %s5
  $region1: #{tpu_custom_call.1} parent=0
    #allocation2 [shape = 'u8[4096]{0}', space=vmem, size = 0x1000, scoped, tag = 'input window, operand 0, single buffered']
    #allocation3 [shape = 's32[2]{0}', space=sflag, size = 0x8, scoped, tag = 'scoped memory for tpu_custom_call.1']
    #allocation4 [shape = 's32[2]{0}', space=sflag, size = 0x8, scoped, tag = 'scoped memory for tpu_custom_call.1']
    #allocation5 [shape = 'u8[196608]{0}', space=vmem, size = 0x30000, scoped, tag = 'input window, operand 1']
    #allocation6 [shape = 's32[2]{0}', space=sflag, size = 0x8, scoped, tag = 'scoped memory for tpu_custom_call.1']
    #allocation7 [shape = 'u8[4096]{0}', space=vmem, size = 0x1000, scoped, tag = 'input window, operand 2, single buffered']
    #allocation8 [shape = 'u8[65536]{0}', space=vmem, size = 0x10000, scoped, tag = 'input window, operand 3']
    #allocation9 [shape = 's32[2]{0}', space=sflag, size = 0x8, scoped, tag = 'scoped memory for tpu_custom_call.1']
    #allocation10 [shape = 'u8[32768]{0}', space=vmem, size = 0x8000, scoped, tag = 'output window, operand 0']
    %9 = vsyncpa [#allocation3], 0
    %10 = vsyncpa [#allocation6], 0
    %s11 = scalar_lea.sflag [#allocation6], 1
    %12 = vsyncpa %s11, 0
    %13 = vsyncpa [#allocation9], 0
    %s14 = scalar_lea.sflag [#allocation9], 1
    %15 = vsyncpa %s14, 0
    %16 = vsyncpa [#allocation4], 0
    %s17 = scalar_lea.sflag [#allocation4], 1
    %18 = vsyncpa %s17, 0
    loop: start=0, step=1, limit=4
    $region2: #{tpu_custom_call.1} parent=1 // loop_pre_header
      _
    $region3: #{tpu_custom_call.1} parent=1 // loop_header
      %s20 = sphi 0, %s24
      %p21 = scmp.ge.s32.totalorder %s20, 4
      %s27 = sphi 0, %s39
      %s28 = sphi 0, %s35
      %s29 = sphi 0, %s27
      %s30 = sphi 0, %s28
      %s31 = sphi 0, %s29
      %s32 = sphi 0, %s30
      %s42 = sphi 0, %s44
      %s45 = sphi 0, %s42
      %s46 = sphi 0, %s45
      %s62 = sphi 0, %s46
      %s68 = sphi 0, %s70
      %s71 = sphi 0, %s68
      %s72 = sphi 0, %s71
      %s88 = sphi 0, %s72
      %s94 = sphi 0, %s96
      %s97 = sphi 0, %s94
      %s98 = sphi 0, %s97
      %s114 = sphi 0, %s98
      %s120 = sphi 0, %s122
      %s123 = sphi 0, %s120
      %s124 = sphi 0, %s123
      %s140 = sphi 0, %s124
      %s148 = sphi 0, %s150
      %s151 = sphi 0, %s148
      %s152 = sphi 0, %s151
      %s168 = sphi 0, %s152
    $region4: #{tpu_custom_call.1} parent=1 // loop_header_branch
      %23 = sbr.rel (%p21) target = $region8
    $region5: #{tpu_custom_call.1} parent=1 // loop_body
      %s25 = ssub.s32 %s20, 1
      %s26 = ssub.s32 %s20, 2
      %s33 = sadd.s32 1, %s28
      %p34 = scmp.ge.s32.totalorder %s33, 2
      %s35 = scalar_select %p34, 0, %s33
      %s36 = sadd.s32 1, %s27
      %s37 = scalar_select %p34, %s36, %s27
      %p38 = scmp.ge.s32.totalorder %s37, 1
      %s39 = scalar_select %p38, 0, %s37
      %s40 = ssub.s32 %s27, %s39
      %p41 = scmp.eq.s32.totalorder %s40, 0
      %s43 = sadd.s32 %s42, 1
      %s44 = scalar_select %p41, %s42, %s43
      %p47 = pneg %p41
      %p48 = scmp.eq.s32.totalorder %s20, 1
      %p49 = por %p47, %p48
      %p50 = scmp.ne.s32.totalorder %s42, %s45
      %p51 = scmp.eq.s32.totalorder %s20, 0
      %p52 = por %p50, %p51
      %p53 = scmp.ne.s32.totalorder %s42, %s45
      %p54 = scmp.eq.s32.totalorder %s25, 1
      %p55 = por %p53, %p54
      %p56 = scmp.ne.s32.totalorder %s45, %s46
      %p57 = scmp.eq.s32.totalorder %s25, 0
      %p58 = por %p56, %p57
      %p59 = scmp.ne.s32.totalorder %s45, %s46
      %p60 = scmp.eq.s32.totalorder %s26, 1
      %p61 = por %p59, %p60
      %p63 = scmp.ne.s32.totalorder %s46, %s62
      %p64 = scmp.eq.s32.totalorder %s26, 0
      %p65 = por %p63, %p64
      %s66 = ssub.s32 %s28, %s35
      %p67 = scmp.eq.s32.totalorder %s66, 0
      %s69 = sadd.s32 %s68, 1
      %s70 = scalar_select %p67, %s68, %s69
      %p73 = pneg %p67
      %p74 = scmp.eq.s32.totalorder %s20, 1
      %p75 = por %p73, %p74
      %p76 = scmp.ne.s32.totalorder %s68, %s71
      %p77 = scmp.eq.s32.totalorder %s20, 0
      %p78 = por %p76, %p77
      %p79 = scmp.ne.s32.totalorder %s68, %s71
      %p80 = scmp.eq.s32.totalorder %s25, 1
      %p81 = por %p79, %p80
      %p82 = scmp.ne.s32.totalorder %s71, %s72
      %p83 = scmp.eq.s32.totalorder %s25, 0
      %p84 = por %p82, %p83
      %p85 = scmp.ne.s32.totalorder %s71, %s72
      %p86 = scmp.eq.s32.totalorder %s26, 1
      %p87 = por %p85, %p86
      %p89 = scmp.ne.s32.totalorder %s72, %s88
      %p90 = scmp.eq.s32.totalorder %s26, 0
      %p91 = por %p89, %p90
      %s92 = ssub.s32 %s27, %s39
      %p93 = scmp.eq.s32.totalorder %s92, 0
      %s95 = sadd.s32 %s94, 1
      %s96 = scalar_select %p93, %s94, %s95
      %p99 = pneg %p93
      %p100 = scmp.eq.s32.totalorder %s20, 1
      %p101 = por %p99, %p100
      %p102 = scmp.ne.s32.totalorder %s94, %s97
      %p103 = scmp.eq.s32.totalorder %s20, 0
      %p104 = por %p102, %p103
      %p105 = scmp.ne.s32.totalorder %s94, %s97
      %p106 = scmp.eq.s32.totalorder %s25, 1
      %p107 = por %p105, %p106
      %p108 = scmp.ne.s32.totalorder %s97, %s98
      %p109 = scmp.eq.s32.totalorder %s25, 0
      %p110 = por %p108, %p109
      %p111 = scmp.ne.s32.totalorder %s97, %s98
      %p112 = scmp.eq.s32.totalorder %s26, 1
      %p113 = por %p111, %p112
      %p115 = scmp.ne.s32.totalorder %s98, %s114
      %p116 = scmp.eq.s32.totalorder %s26, 0
      %p117 = por %p115, %p116
      %s118 = ssub.s32 %s28, %s35
      %p119 = scmp.eq.s32.totalorder %s118, 0
      %s121 = sadd.s32 %s120, 1
      %s122 = scalar_select %p119, %s120, %s121
      %p125 = pneg %p119
      %p126 = scmp.eq.s32.totalorder %s20, 1
      %p127 = por %p125, %p126
      %p128 = scmp.ne.s32.totalorder %s120, %s123
      %p129 = scmp.eq.s32.totalorder %s20, 0
      %p130 = por %p128, %p129
      %p131 = scmp.ne.s32.totalorder %s120, %s123
      %p132 = scmp.eq.s32.totalorder %s25, 1
      %p133 = por %p131, %p132
      %p134 = scmp.ne.s32.totalorder %s123, %s124
      %p135 = scmp.eq.s32.totalorder %s25, 0
      %p136 = por %p134, %p135
      %p137 = scmp.ne.s32.totalorder %s123, %s124
      %p138 = scmp.eq.s32.totalorder %s26, 1
      %p139 = por %p137, %p138
      %p141 = scmp.ne.s32.totalorder %s124, %s140
      %p142 = scmp.eq.s32.totalorder %s26, 0
      %p143 = por %p141, %p142
      %s144 = ssub.s32 %s27, %s39
      %s145 = ssub.s32 %s28, %s35
      %s146 = sor.u32 %s144, %s145
      %p147 = scmp.eq.s32.totalorder %s146, 0
      %s149 = sadd.s32 %s148, 1
      %s150 = scalar_select %p147, %s148, %s149
      %p153 = pneg %p147
      %p154 = scmp.eq.s32.totalorder %s20, 1
      %p155 = por %p153, %p154
      %p156 = scmp.ne.s32.totalorder %s148, %s151
      %p157 = scmp.eq.s32.totalorder %s20, 0
      %p158 = por %p156, %p157
      %p159 = scmp.ne.s32.totalorder %s148, %s151
      %p160 = scmp.eq.s32.totalorder %s25, 1
      %p161 = por %p159, %p160
      %p162 = scmp.ne.s32.totalorder %s151, %s152
      %p163 = scmp.eq.s32.totalorder %s25, 0
      %p164 = por %p162, %p163
      %p165 = scmp.ne.s32.totalorder %s151, %s152
      %p166 = scmp.eq.s32.totalorder %s26, 1
      %p167 = por %p165, %p166
      %p169 = scmp.ne.s32.totalorder %s152, %s168
      %p170 = scmp.eq.s32.totalorder %s26, 0
      %p171 = por %p169, %p170
      %p172 = scmp.le.s32.totalorder 1, %s20
      %p173 = scmp.lt.s32.totalorder %s20, 3
      %p174 = pnand %p172, %p173
      %p175 = pneg %p174
      // Predicated region
      $region9: #{tpu_custom_call.1} parent=5 // pred_check
        _
      $region10: #{tpu_custom_call.1} parent=5 // pred_check_branch
        %177 = sbr.rel (%p174) target = $region12
      $region11: #{tpu_custom_call.1} parent=5 // pred_region
        %s178 = ssub.s32 %s20, 1
        // Predicated region
        $region13: #{tpu_custom_call.1} parent=11 // pred_check
          %p179 = pneg %p58
        $region14: #{tpu_custom_call.1} parent=11 // pred_check_branch
          %181 = sbr.rel (%p179) target = $region16
        $region15: #{tpu_custom_call.1} parent=11 // pred_region
          %s183 = ssub.s32 128, 128
          %184 = vsyncadd [#allocation3], %s183
          %s185 = smul.addr %s29, 128
          %s186 = scalar_lea.hbm %s0, %s185
          %s188 = sshll.u32 [#allocation2], 4
          %s189 = int_to_ptr.vmem [resolvable:$true] %s188
          %191 = dma.hbm_to_vmem [thread:$0]  %s186, 128, %s189, [#allocation3]
        $region16: #{tpu_custom_call.1} parent=11 // pred_fallthru
          _
        // Predicated region
        $region17: #{tpu_custom_call.1} parent=11 // pred_check
          %p192 = pneg %p110
        $region18: #{tpu_custom_call.1} parent=11 // pred_check_branch
          %194 = sbr.rel (%p192) target = $region20
        $region19: #{tpu_custom_call.1} parent=11 // pred_region
          %s196 = ssub.s32 128, 128
          %197 = vsyncadd [#allocation6], %s196
          %s198 = smul.addr %s29, 128
          %s199 = scalar_lea.hbm %s2, %s198
          %s201 = sshll.u32 [#allocation7], 4
          %s202 = int_to_ptr.vmem [resolvable:$true] %s201
          %204 = dma.hbm_to_vmem [thread:$0]  %s199, 128, %s202, [#allocation6]
        $region20: #{tpu_custom_call.1} parent=11 // pred_fallthru
          _
      $region12: #{tpu_custom_call.1} parent=5 // pred_fallthru
        _
      %p205 = scmp.lt.s32.totalorder %s20, 2
      // Predicated region
      $region21: #{tpu_custom_call.1} parent=5 // pred_check
        %p206 = pneg %p205
      $region22: #{tpu_custom_call.1} parent=5 // pred_check_branch
        %208 = sbr.rel (%p206) target = $region24
      $region23: #{tpu_custom_call.1} parent=5 // pred_region
        // Predicated region
        $region25: #{tpu_custom_call.1} parent=23 // pred_check
          %p209 = pneg %p78
        $region26: #{tpu_custom_call.1} parent=23 // pred_check_branch
          %211 = sbr.rel (%p209) target = $region28
        $region27: #{tpu_custom_call.1} parent=23 // pred_region
          %s212 = sand.u32 %s20, 1
          %s213 = scalar_lea.sflag [#allocation6], %s212
          %s214 = sand.u32 %s68, 1
          %s215 = smul.addr %s214, 192
          %s216 = scalar_lea.vmem [#allocation5], %s215
          %s217 = smul.u32 4, %s28
          %s219 = ssub.s32 3072, 3072
          %220 = vsyncadd %s213, %s219
          %s221 = smul.addr %s217, 128
          %s222 = scalar_lea.hbm %s1, %s221
          %s223 = sshll.u32 %s216, 4
          %s224 = int_to_ptr.vmem [resolvable:$true] %s223
          %229 = dma.hbm_to_vmem [thread:$0]  %s222, 3072, %s224, %s213, 1024, 512, 32
        $region28: #{tpu_custom_call.1} parent=23 // pred_fallthru
          _
        // Predicated region
        $region29: #{tpu_custom_call.1} parent=23 // pred_check
          %p230 = pneg %p130
        $region30: #{tpu_custom_call.1} parent=23 // pred_check_branch
          %232 = sbr.rel (%p230) target = $region32
        $region31: #{tpu_custom_call.1} parent=23 // pred_region
          %s233 = sand.u32 %s120, 1
          %s234 = scalar_lea.sflag [#allocation9], %s233
          %s235 = sand.u32 %s120, 1
          %s236 = smul.addr %s235, 64
          %s237 = scalar_lea.vmem [#allocation8], %s236
          %s238 = smul.u32 4, %s28
          %s240 = ssub.s32 1024, 1024
          %241 = vsyncadd %s234, %s240
          %s242 = smul.addr %s238, 128
          %s243 = scalar_lea.hbm %s3, %s242
          %s244 = sshll.u32 %s237, 4
          %s245 = int_to_ptr.vmem [resolvable:$true] %s244
          %250 = dma.hbm_to_vmem [thread:$0]  %s243, 1024, %s245, %s234, 1024, 512, 32
        $region32: #{tpu_custom_call.1} parent=23 // pred_fallthru
          _
      $region24: #{tpu_custom_call.1} parent=5 // pred_fallthru
        _
      %p251 = scmp.le.s32.totalorder 1, %s20
      %p252 = scmp.lt.s32.totalorder %s20, 3
      %p253 = pnand %p251, %p252
      %p254 = pneg %p253
      // Predicated region
      $region33: #{tpu_custom_call.1} parent=5 // pred_check
        _
      $region34: #{tpu_custom_call.1} parent=5 // pred_check_branch
        %256 = sbr.rel (%p253) target = $region36
      $region35: #{tpu_custom_call.1} parent=5 // pred_region
        %s257 = ssub.s32 %s20, 1
        // Predicated region
        $region37: #{tpu_custom_call.1} parent=35 // pred_check
          %p258 = pneg %p58
        $region38: #{tpu_custom_call.1} parent=35 // pred_check_branch
          %260 = sbr.rel (%p258) target = $region40
        $region39: #{tpu_custom_call.1} parent=35 // pred_region
          %261 = dma.done [#allocation3], 128
        $region40: #{tpu_custom_call.1} parent=35 // pred_fallthru
          _
        %s262 = sand.u32 %s25, 1
        %s263 = scalar_lea.sflag [#allocation6], %s262
        %s264 = sand.u32 %s71, 1
        %s265 = smul.addr %s264, 192
        %s266 = scalar_lea.vmem [#allocation5], %s265
        // Predicated region
        $region41: #{tpu_custom_call.1} parent=35 // pred_check
          %p267 = pneg %p84
        $region42: #{tpu_custom_call.1} parent=35 // pred_check_branch
          %269 = sbr.rel (%p267) target = $region44
        $region43: #{tpu_custom_call.1} parent=35 // pred_region
          %270 = dma.done %s263, 3072
        $region44: #{tpu_custom_call.1} parent=35 // pred_fallthru
          _
        // Predicated region
        $region45: #{tpu_custom_call.1} parent=35 // pred_check
          %p271 = pneg %p110
        $region46: #{tpu_custom_call.1} parent=35 // pred_check_branch
          %273 = sbr.rel (%p271) target = $region48
        $region47: #{tpu_custom_call.1} parent=35 // pred_region
          %274 = dma.done [#allocation6], 128
        $region48: #{tpu_custom_call.1} parent=35 // pred_fallthru
          _
        %s275 = sand.u32 %s123, 1
        %s276 = scalar_lea.sflag [#allocation9], %s275
        %s277 = sand.u32 %s123, 1
        %s278 = smul.addr %s277, 64
        %s279 = scalar_lea.vmem [#allocation8], %s278
        // Predicated region
        $region49: #{tpu_custom_call.1} parent=35 // pred_check
          %p280 = pneg %p136
        $region50: #{tpu_custom_call.1} parent=35 // pred_check_branch
          %282 = sbr.rel (%p280) target = $region52
        $region51: #{tpu_custom_call.1} parent=35 // pred_region
          %283 = dma.done %s276, 1024
        $region52: #{tpu_custom_call.1} parent=35 // pred_fallthru
          _
        %p284 = pneg %p58
        %p285 = pneg %p55
        %s286 = sand.u32 %s25, 1
        %s287 = scalar_lea.sflag [#allocation6], %s286
        %s288 = sand.u32 %s71, 1
        %s289 = smul.addr %s288, 192
        %s290 = scalar_lea.vmem [#allocation5], %s289
        %p291 = pneg %p84
        %p292 = pneg %p81
        %p293 = pneg %p110
        %p294 = pneg %p107
        %s295 = sand.u32 %s123, 1
        %s296 = scalar_lea.sflag [#allocation9], %s295
        %s297 = sand.u32 %s123, 1
        %s298 = smul.addr %s297, 64
        %s299 = scalar_lea.vmem [#allocation8], %s298
        %p300 = pneg %p136
        %p301 = pneg %p133
        %p302 = pneg %p164
        %p303 = pneg %p161
        %s304 = sand.u32 %s151, 1
        %s305 = scalar_lea.sflag [#allocation4], %s304
        %s306 = sand.u32 %s151, 1
        %s307 = smul.addr %s306, 32
        %s308 = scalar_lea.vmem [#allocation10], %s307
        %s309 = smul.u32 4, %s30
        %s310 = smul.u32 4, %s30
        %s311 = smul.u32 4, %s30
        %v312 = vld [vmem:[#allocation2] sm:$0xff]
        %v313 = vld [vmem:[%s266] sm:$0xff]
        %v314 = vld [vmem:[%s266 + $0x8] sm:$0xff]
        %v315 = vld [vmem:[%s266 + $0x10] sm:$0xff]
        %v316 = vld [vmem:[%s266 + $0x18] sm:$0xff]
        %v317 = vld [vmem:[%s266 + $0x20] sm:$0xff]
        %v318 = vld [vmem:[%s266 + $0x28] sm:$0xff]
        %v319 = vld [vmem:[%s266 + $0x30] sm:$0xff]
        %v320 = vld [vmem:[%s266 + $0x38] sm:$0xff]
        %v321 = vld [vmem:[%s266 + $0x40] sm:$0xff]
        %v322 = vld [vmem:[%s266 + $0x48] sm:$0xff]
        %v323 = vld [vmem:[%s266 + $0x50] sm:$0xff]
        %v324 = vld [vmem:[%s266 + $0x58] sm:$0xff]
        %v325 = vld [vmem:[%s266 + $0x60] sm:$0xff]
        %v326 = vld [vmem:[%s266 + $0x68] sm:$0xff]
        %v327 = vld [vmem:[%s266 + $0x70] sm:$0xff]
        %v328 = vld [vmem:[%s266 + $0x78] sm:$0xff]
        %v329 = vld [vmem:[%s266 + $0x80] sm:$0xff]
        %v330 = vld [vmem:[%s266 + $0x88] sm:$0xff]
        %v331 = vld [vmem:[%s266 + $0x90] sm:$0xff]
        %v332 = vld [vmem:[%s266 + $0x98] sm:$0xff]
        %v333 = vld [vmem:[%s266 + $0xa0] sm:$0xff]
        %v334 = vld [vmem:[%s266 + $0xa8] sm:$0xff]
        %v335 = vld [vmem:[%s266 + $0xb0] sm:$0xff]
        %v336 = vld [vmem:[%s266 + $0xb8] sm:$0xff]
        %vm337 = vcmask 392192
        %v339 = vsel %vm337, %v312, 0
        %341 = vmatprep.subr.mxu0 %v314
        %342 = vmatpush1.msra.mxu0 %v313
        %343 = vmatprep.subr.mxu0 %v318
        %344 = vmatpush1.msra.mxu0 %v317
        %345 = vmatprep.subr.mxu0 %v322
        %346 = vmatpush1.msra.mxu0 %v321
        %347 = vmatprep.subr.mxu0 %v326
        %348 = vmatpush1.msra.mxu0 %v325
        %349 = vmatprep.subr.mxu0 %v330
        %350 = vmatpush1.msra.mxu0 %v329
        %351 = vmatprep.subr.mxu0 %v334
        %352 = vmatpush1.msra.mxu0 %v333
        %353 = vmatprep.subr.mxu0 0.0
        %354 = vmatpush1.msra.mxu0 0.0
        %355 = vmatprep.subr.mxu0 0.0
        %356 = vmatpush1.msra.mxu0 0.0
        %357 = vmatprep.subr.mxu0 0.0
        %358 = vmatpush1.msra.mxu0 0.0
        %359 = vmatprep.subr.mxu0 0.0
        %360 = vmatpush1.msra.mxu0 0.0
        %361 = vmatprep.subr.mxu0 0.0
        %362 = vmatpush1.msra.mxu0 0.0
        %363 = vmatprep.subr.mxu0 0.0
        %364 = vmatpush1.msra.mxu0 0.0
        %365 = vmatprep.subr.mxu0 0.0
        %366 = vmatpush1.msra.mxu0 0.0
        %367 = vmatprep.subr.mxu0 0.0
        %368 = vmatpush1.msra.mxu0 0.0
        %369 = vmatprep.subr.mxu0 0.0
        %370 = vmatpush1.msra.mxu0 0.0
        %371 = vmatprep.subr.mxu0 0.0
        %372 = vmatpush1.msra.mxu0 0.0
        %373 = vmatprep.subr.mxu0 0.0
        %374 = vmatpush1.msra.mxu0 0.0
        %375 = vmatprep.subr.mxu0 0.0
        %376 = vmatpush1.msra.mxu0 0.0
        %377 = vmatprep.subr.mxu0 0.0
        %378 = vmatpush1.msra.mxu0 0.0
        %379 = vmatprep.subr.mxu0 0.0
        %380 = vmatpush1.msra.mxu0 0.0
        %381 = vmatprep.subr.mxu0 0.0
        %382 = vmatpush1.msra.mxu0 0.0
        %383 = vmatprep.subr.mxu0 0.0
        %384 = vmatpush1.msra.mxu0 0.0
        %385 = vmatprep.subr.mxu0 0.0
        %386 = vmatpush1.msra.mxu0 0.0
        %387 = vmatprep.subr.mxu0 0.0
        %388 = vmatpush1.msra.mxu0 0.0
        %389 = vmatprep.subr.mxu0 0.0
        %390 = vmatpush1.msra.mxu0 0.0
        %391 = vmatprep.subr.mxu0 0.0
        %392 = vmatpush1.msra.mxu0 0.0
        %393 = vmatprep.subr.mxu0 0.0
        %394 = vmatpush1.msra.mxu0 0.0
        %395 = vmatprep.subr.mxu0 0.0
        %396 = vmatpush1.msra.mxu0 0.0
        %397 = vmatprep.subr.mxu0 0.0
        %398 = vmatpush1.msra.mxu0 0.0
        %399 = vmatprep.subr.mxu0 0.0
        %400 = vmatpush1.msra.mxu0 0.0
        %401 = vmatprep.subr.mxu0 0.0
        %402 = vmatpush1.msra.mxu0 0.0
        %403 = vmatprep.subr.mxu0 0.0
        %404 = vmatpush1.msra.mxu0 0.0
        %405 = vmatprep.mubr.f32.mxu0 0.0
        %406 = vmatmul.mubr.f32.gmra.mrb[0].mxu0 %v339
        %v407 = vpop.f32.mrb[0].mxu0
        %v408 = vadd.f32 0.0, %v407
        %v409 = vpop.f32.mrb[0].mxu0
        %v410 = vadd.f32 0.0, %v409
        %411 = vdwg.mxu0
        %412 = vmatprep.subr.mxu0 %v316
        %413 = vmatpush1.msra.mxu0 %v315
        %414 = vmatprep.subr.mxu0 %v320
        %415 = vmatpush1.msra.mxu0 %v319
        %416 = vmatprep.subr.mxu0 %v324
        %417 = vmatpush1.msra.mxu0 %v323
        %418 = vmatprep.subr.mxu0 %v328
        %419 = vmatpush1.msra.mxu0 %v327
        %420 = vmatprep.subr.mxu0 %v332
        %421 = vmatpush1.msra.mxu0 %v331
        %422 = vmatprep.subr.mxu0 %v336
        %423 = vmatpush1.msra.mxu0 %v335
        %424 = vmatprep.subr.mxu0 0.0
        %425 = vmatpush1.msra.mxu0 0.0
        %426 = vmatprep.subr.mxu0 0.0
        %427 = vmatpush1.msra.mxu0 0.0
        %428 = vmatprep.subr.mxu0 0.0
        %429 = vmatpush1.msra.mxu0 0.0
        %430 = vmatprep.subr.mxu0 0.0
        %431 = vmatpush1.msra.mxu0 0.0
        %432 = vmatprep.subr.mxu0 0.0
        %433 = vmatpush1.msra.mxu0 0.0
        %434 = vmatprep.subr.mxu0 0.0
        %435 = vmatpush1.msra.mxu0 0.0
        %436 = vmatprep.subr.mxu0 0.0
        %437 = vmatpush1.msra.mxu0 0.0
        %438 = vmatprep.subr.mxu0 0.0
        %439 = vmatpush1.msra.mxu0 0.0
        %440 = vmatprep.subr.mxu0 0.0
        %441 = vmatpush1.msra.mxu0 0.0
        %442 = vmatprep.subr.mxu0 0.0
        %443 = vmatpush1.msra.mxu0 0.0
        %444 = vmatprep.subr.mxu0 0.0
        %445 = vmatpush1.msra.mxu0 0.0
        %446 = vmatprep.subr.mxu0 0.0
        %447 = vmatpush1.msra.mxu0 0.0
        %448 = vmatprep.subr.mxu0 0.0
        %449 = vmatpush1.msra.mxu0 0.0
        %450 = vmatprep.subr.mxu0 0.0
        %451 = vmatpush1.msra.mxu0 0.0
        %452 = vmatprep.subr.mxu0 0.0
        %453 = vmatpush1.msra.mxu0 0.0
        %454 = vmatprep.subr.mxu0 0.0
        %455 = vmatpush1.msra.mxu0 0.0
        %456 = vmatprep.subr.mxu0 0.0
        %457 = vmatpush1.msra.mxu0 0.0
        %458 = vmatprep.subr.mxu0 0.0
        %459 = vmatpush1.msra.mxu0 0.0
        %460 = vmatprep.subr.mxu0 0.0
        %461 = vmatpush1.msra.mxu0 0.0
        %462 = vmatprep.subr.mxu0 0.0
        %463 = vmatpush1.msra.mxu0 0.0
        %464 = vmatprep.subr.mxu0 0.0
        %465 = vmatpush1.msra.mxu0 0.0
        %466 = vmatprep.subr.mxu0 0.0
        %467 = vmatpush1.msra.mxu0 0.0
        %468 = vmatprep.subr.mxu0 0.0
        %469 = vmatpush1.msra.mxu0 0.0
        %470 = vmatprep.subr.mxu0 0.0
        %471 = vmatpush1.msra.mxu0 0.0
        %472 = vmatprep.subr.mxu0 0.0
        %473 = vmatpush1.msra.mxu0 0.0
        %474 = vmatprep.subr.mxu0 0.0
        %475 = vmatpush1.msra.mxu0 0.0
        %476 = vmatprep.mubr.f32.mxu0 0.0
        %477 = vmatmul.mubr.f32.gmra.mrb[0].mxu0 %v339
        %v478 = vpop.f32.mrb[0].mxu0
        %v479 = vadd.f32 0.0, %v478
        %v480 = vpop.f32.mrb[0].mxu0
        %v481 = vadd.f32 0.0, %v480
        %482 = vdwg.mxu0
        %v483 = vmul.f32 %v408, 0.03125
        %v484 = vmul.f32 %v410, 0.03125
        %v485 = vmul.f32 %v479, 0.03125
        %v486 = vmul.f32 %v481, 0.03125
        %v487 = vld [vmem:[#allocation7] sm:$0xff]
        %v488 = vld [vmem:[%s279] sm:$0xff]
        %v489 = vld [vmem:[%s279 + $0x8] sm:$0xff]
        %v490 = vld [vmem:[%s279 + $0x10] sm:$0xff]
        %v491 = vld [vmem:[%s279 + $0x18] sm:$0xff]
        %v492 = vld [vmem:[%s279 + $0x20] sm:$0xff]
        %v493 = vld [vmem:[%s279 + $0x28] sm:$0xff]
        %v494 = vld [vmem:[%s279 + $0x30] sm:$0xff]
        %v495 = vld [vmem:[%s279 + $0x38] sm:$0xff]
        %vm496 = vcmask 130048
        %v498 = vsel %vm496, %v487, 0
        %500 = vmatprep.subr.mxu0 %v489
        %501 = vmatpush1.msra.mxu0 %v488
        %502 = vmatprep.subr.mxu0 %v493
        %503 = vmatpush1.msra.mxu0 %v492
        %504 = vmatprep.subr.mxu0 0.0
        %505 = vmatpush1.msra.mxu0 0.0
        %506 = vmatprep.subr.mxu0 0.0
        %507 = vmatpush1.msra.mxu0 0.0
        %508 = vmatprep.subr.mxu0 0.0
        %509 = vmatpush1.msra.mxu0 0.0
        %510 = vmatprep.subr.mxu0 0.0
        %511 = vmatpush1.msra.mxu0 0.0
        %512 = vmatprep.subr.mxu0 0.0
        %513 = vmatpush1.msra.mxu0 0.0
        %514 = vmatprep.subr.mxu0 0.0
        %515 = vmatpush1.msra.mxu0 0.0
        %516 = vmatprep.subr.mxu0 0.0
        %517 = vmatpush1.msra.mxu0 0.0
        %518 = vmatprep.subr.mxu0 0.0
        %519 = vmatpush1.msra.mxu0 0.0
        %520 = vmatprep.subr.mxu0 0.0
        %521 = vmatpush1.msra.mxu0 0.0
        %522 = vmatprep.subr.mxu0 0.0
        %523 = vmatpush1.msra.mxu0 0.0
        %524 = vmatprep.subr.mxu0 0.0
        %525 = vmatpush1.msra.mxu0 0.0
        %526 = vmatprep.subr.mxu0 0.0
        %527 = vmatpush1.msra.mxu0 0.0
        %528 = vmatprep.subr.mxu0 0.0
        %529 = vmatpush1.msra.mxu0 0.0
        %530 = vmatprep.subr.mxu0 0.0
        %531 = vmatpush1.msra.mxu0 0.0
        %532 = vmatprep.subr.mxu0 0.0
        %533 = vmatpush1.msra.mxu0 0.0
        %534 = vmatprep.subr.mxu0 0.0
        %535 = vmatpush1.msra.mxu0 0.0
        %536 = vmatprep.subr.mxu0 0.0
        %537 = vmatpush1.msra.mxu0 0.0
        %538 = vmatprep.subr.mxu0 0.0
        %539 = vmatpush1.msra.mxu0 0.0
        %540 = vmatprep.subr.mxu0 0.0
        %541 = vmatpush1.msra.mxu0 0.0
        %542 = vmatprep.subr.mxu0 0.0
        %543 = vmatpush1.msra.mxu0 0.0
        %544 = vmatprep.subr.mxu0 0.0
        %545 = vmatpush1.msra.mxu0 0.0
        %546 = vmatprep.subr.mxu0 0.0
        %547 = vmatpush1.msra.mxu0 0.0
        %548 = vmatprep.subr.mxu0 0.0
        %549 = vmatpush1.msra.mxu0 0.0
        %550 = vmatprep.subr.mxu0 0.0
        %551 = vmatpush1.msra.mxu0 0.0
        %552 = vmatprep.subr.mxu0 0.0
        %553 = vmatpush1.msra.mxu0 0.0
        %554 = vmatprep.subr.mxu0 0.0
        %555 = vmatpush1.msra.mxu0 0.0
        %556 = vmatprep.subr.mxu0 0.0
        %557 = vmatpush1.msra.mxu0 0.0
        %558 = vmatprep.subr.mxu0 0.0
        %559 = vmatpush1.msra.mxu0 0.0
        %560 = vmatprep.subr.mxu0 0.0
        %561 = vmatpush1.msra.mxu0 0.0
        %562 = vmatprep.subr.mxu0 0.0
        %563 = vmatpush1.msra.mxu0 0.0
        %564 = vmatprep.mubr.f32.mxu0 0.0
        %565 = vmatmul.mubr.f32.gmra.mrb[0].mxu0 %v498
        %v566 = vpop.f32.mrb[0].mxu0
        %v567 = vadd.f32 0.0, %v566
        %v568 = vpop.f32.mrb[0].mxu0
        %v569 = vadd.f32 0.0, %v568
        %570 = vdwg.mxu0
        %571 = vmatprep.subr.mxu0 %v491
        %572 = vmatpush1.msra.mxu0 %v490
        %573 = vmatprep.subr.mxu0 %v495
        %574 = vmatpush1.msra.mxu0 %v494
        %575 = vmatprep.subr.mxu0 0.0
        %576 = vmatpush1.msra.mxu0 0.0
        %577 = vmatprep.subr.mxu0 0.0
        %578 = vmatpush1.msra.mxu0 0.0
        %579 = vmatprep.subr.mxu0 0.0
        %580 = vmatpush1.msra.mxu0 0.0
        %581 = vmatprep.subr.mxu0 0.0
        %582 = vmatpush1.msra.mxu0 0.0
        %583 = vmatprep.subr.mxu0 0.0
        %584 = vmatpush1.msra.mxu0 0.0
        %585 = vmatprep.subr.mxu0 0.0
        %586 = vmatpush1.msra.mxu0 0.0
        %587 = vmatprep.subr.mxu0 0.0
        %588 = vmatpush1.msra.mxu0 0.0
        %589 = vmatprep.subr.mxu0 0.0
        %590 = vmatpush1.msra.mxu0 0.0
        %591 = vmatprep.subr.mxu0 0.0
        %592 = vmatpush1.msra.mxu0 0.0
        %593 = vmatprep.subr.mxu0 0.0
        %594 = vmatpush1.msra.mxu0 0.0
        %595 = vmatprep.subr.mxu0 0.0
        %596 = vmatpush1.msra.mxu0 0.0
        %597 = vmatprep.subr.mxu0 0.0
        %598 = vmatpush1.msra.mxu0 0.0
        %599 = vmatprep.subr.mxu0 0.0
        %600 = vmatpush1.msra.mxu0 0.0
        %601 = vmatprep.subr.mxu0 0.0
        %602 = vmatpush1.msra.mxu0 0.0
        %603 = vmatprep.subr.mxu0 0.0
        %604 = vmatpush1.msra.mxu0 0.0
        %605 = vmatprep.subr.mxu0 0.0
        %606 = vmatpush1.msra.mxu0 0.0
        %607 = vmatprep.subr.mxu0 0.0
        %608 = vmatpush1.msra.mxu0 0.0
        %609 = vmatprep.subr.mxu0 0.0
        %610 = vmatpush1.msra.mxu0 0.0
        %611 = vmatprep.subr.mxu0 0.0
        %612 = vmatpush1.msra.mxu0 0.0
        %613 = vmatprep.subr.mxu0 0.0
        %614 = vmatpush1.msra.mxu0 0.0
        %615 = vmatprep.subr.mxu0 0.0
        %616 = vmatpush1.msra.mxu0 0.0
        %617 = vmatprep.subr.mxu0 0.0
        %618 = vmatpush1.msra.mxu0 0.0
        %619 = vmatprep.subr.mxu0 0.0
        %620 = vmatpush1.msra.mxu0 0.0
        %621 = vmatprep.subr.mxu0 0.0
        %622 = vmatpush1.msra.mxu0 0.0
        %623 = vmatprep.subr.mxu0 0.0
        %624 = vmatpush1.msra.mxu0 0.0
        %625 = vmatprep.subr.mxu0 0.0
        %626 = vmatpush1.msra.mxu0 0.0
        %627 = vmatprep.subr.mxu0 0.0
        %628 = vmatpush1.msra.mxu0 0.0
        %629 = vmatprep.subr.mxu0 0.0
        %630 = vmatpush1.msra.mxu0 0.0
        %631 = vmatprep.subr.mxu0 0.0
        %632 = vmatpush1.msra.mxu0 0.0
        %633 = vmatprep.subr.mxu0 0.0
        %634 = vmatpush1.msra.mxu0 0.0
        %635 = vmatprep.mubr.f32.mxu0 0.0
        %636 = vmatmul.mubr.f32.gmra.mrb[0].mxu0 %v498
        %v637 = vpop.f32.mrb[0].mxu0
        %v638 = vadd.f32 0.0, %v637
        %v639 = vpop.f32.mrb[0].mxu0
        %v640 = vadd.f32 0.0, %v639
        %641 = vdwg.mxu0
        %v642 = vmul.f32 %v483, %v567
        %v643 = vmul.f32 %v484, %v569
        %v644 = vmul.f32 %v485, %v638
        %v645 = vmul.f32 %v486, %v640
        %646 = vst [vmem:[%s308] sm:$0xff] %v642
        %647 = vst [vmem:[%s308 + $0x8] sm:$0xff] %v643
        %648 = vst [vmem:[%s308 + $0x10] sm:$0xff] %v644
        %649 = vst [vmem:[%s308 + $0x18] sm:$0xff] %v645
        %s650 = sand.u32 %s151, 1
        %s651 = scalar_lea.sflag [#allocation4], %s650
        %s652 = sand.u32 %s151, 1
        %s653 = smul.addr %s652, 32
        %s654 = scalar_lea.vmem [#allocation10], %s653
        // Predicated region
        $region53: #{tpu_custom_call.1} parent=35 // pred_check
          %p655 = pneg %p161
        $region54: #{tpu_custom_call.1} parent=35 // pred_check_branch
          %657 = sbr.rel (%p655) target = $region56
        $region55: #{tpu_custom_call.1} parent=35 // pred_region
          %s658 = smul.u32 4, %s30
          %s660 = ssub.s32 512, 512
          %661 = vsyncadd %s651, %s660
          %s662 = smul.addr %s29, 8
          %s663 = sadd.s32 %s658, %s662
          %s664 = smul.addr %s663, 128
          %s665 = scalar_lea.hbm %s4, %s664
          %s667 = sshll.u32 %s654, 4
          %s668 = int_to_ptr.vmem [resolvable:$true] %s667
          %670 = dma.vmem_to_hbm [thread:$0]  %s668, 512, %s665, %s651
        $region56: #{tpu_custom_call.1} parent=35 // pred_fallthru
          _
      $region36: #{tpu_custom_call.1} parent=5 // pred_fallthru
        _
      %p671 = scmp.le.s32.totalorder 2, %s20
      // Predicated region
      $region57: #{tpu_custom_call.1} parent=5 // pred_check
        %p672 = pneg %p671
      $region58: #{tpu_custom_call.1} parent=5 // pred_check_branch
        %674 = sbr.rel (%p672) target = $region60
      $region59: #{tpu_custom_call.1} parent=5 // pred_region
        %s675 = ssub.s32 %s20, 2
        // Predicated region
        $region61: #{tpu_custom_call.1} parent=59 // pred_check
          %p676 = pneg %p167
        $region62: #{tpu_custom_call.1} parent=59 // pred_check_branch
          %678 = sbr.rel (%p676) target = $region64
        $region63: #{tpu_custom_call.1} parent=59 // pred_region
          %s679 = sand.u32 %s152, 1
          %s680 = scalar_lea.sflag [#allocation4], %s679
          %s681 = sand.u32 %s152, 1
          %s682 = smul.addr %s681, 32
          %s683 = scalar_lea.vmem [#allocation10], %s682
          %684 = dma.done %s680, 512
        $region64: #{tpu_custom_call.1} parent=59 // pred_fallthru
          _
      $region60: #{tpu_custom_call.1} parent=5 // pred_fallthru
        _
    $region6: #{tpu_custom_call.1} parent=1 // loop_footer
      %s24 = sadd.s32 1, %s20
    $region7: #{tpu_custom_call.1} parent=1 // loop_footer_branch
      %19 = sbr.rel target = $region3
    $region8: #{tpu_custom_call.1} parent=1 // loop_exit
      _
    %685 = vsyncpa [#allocation3], 1
    %s686 = scalar_lea.sflag [#allocation3], 1
    %687 = vsyncpa %s686, 1
    %688 = vsyncpa [#allocation6], 1
    %s689 = scalar_lea.sflag [#allocation6], 1
    %690 = vsyncpa %s689, 1
    %691 = vsyncpa [#allocation9], 1
    %s692 = scalar_lea.sflag [#allocation9], 1
    %693 = vsyncpa %s692, 1
    %694 = vsyncpa [#allocation4], 1
    %s695 = scalar_lea.sflag [#allocation4], 1
    %696 = vsyncpa %s695, 1

</llo_original>
